<compile_context>
chip_gen: v7x
topology: tpu7x:2x2x1
jax: 0.10.0
libtpu: 0.0.40
codegen_flags: <defaults>
</compile_context>

<pallas_src>
import functools

import jax
import jax.numpy as jnp
from jax.experimental import pallas as pl
from jax.experimental.pallas import tpu as pltpu


def _round_up(x, m):
    return (x + m - 1) // m * m


def _cdiv(a, b):
    return -(-a // b)


def gaussian_policy_kernel(x_ref, w1_ref, b1_ref, w2_ref, b2_ref,
                           w3_ref, b3_ref, log_std_ref, noise_ref, out_ref):
    # Hidden layers: bf16 MXU operands, f32 accumulation, f32 bias/tanh (safe on v5e EUP/VPU).
    x = x_ref[...].astype(jnp.bfloat16)
    h1 = jnp.tanh(
        jnp.dot(x, w1_ref[...], preferred_element_type=jnp.float32) + b1_ref[...])
    h2 = jnp.tanh(
        jnp.dot(h1.astype(jnp.bfloat16), w2_ref[...],
                preferred_element_type=jnp.float32) + b2_ref[...])
    # Final (tiny) layer in f32, unpadded output width -> lane-thin action stream.
    mean = jnp.dot(h2, w3_ref[...], preferred_element_type=jnp.float32) + b3_ref[...]
    std = jnp.exp(log_std_ref[...])               # (1, D_out), EUP
    out_ref[...] = mean + std * noise_ref[...]    # reparameterized Normal(mean, std) sample


def _choose_batch_tiling(batch, batch_tile):
    # Large batch: ~batch_tile rows/step (amortizes the ~0.35 us per-grid-step overhead).
    # Mid batch: split into >=2 tiles so both v7x TensorCores get work on the "parallel" axis.
    # Small batch: single tile rounded up to 8 sublanes.
    num_tiles = max(1, _cdiv(batch, batch_tile))
    if num_tiles == 1 and batch >= 512:
        num_tiles = 2
    tb = _round_up(_cdiv(batch, num_tiles), 8)
    return num_tiles, tb


@functools.partial(jax.jit, static_argnames=("batch_tile",))
def gaussian_policy_forward(state, params, noise, *, batch_tile=1024):
    """state: [B, D_in] f32; noise: [B, D_out] f32 standard-normal eps.

    params are the tensors from init_params. Returns [B, D_out] f32 actions
    = mean(state) + exp(log_std) * eps.
    """
    w1, b1, w2, b2, w3, b3, log_std = params
    B, d_in = state.shape
    h1p, h2p = w1.shape[1], w2.shape[1]
    d_out = w3.shape[1]

    num_tiles, tb = _choose_batch_tiling(B, batch_tile)
    b_pad = num_tiles * tb

    state = state.astype(jnp.float32)
    noise = noise.astype(jnp.float32)
    if b_pad != B:
        # Pad only the batch (sublane) dim; feature lanes keep their true widths,
        # so no extra HBM traffic is created for the noise/output streams.
        state = jnp.pad(state, ((0, b_pad - B), (0, 0)))
        noise = jnp.pad(noise, ((0, b_pad - B), (0, 0)))

    cost = pl.CostEstimate(
        flops=2 * b_pad * (d_in * h1p + h1p * h2p + h2p * d_out),
        transcendentals=b_pad * (h1p + h2p) + d_out,
        bytes_accessed=int(
            sum(int(a.size) * a.dtype.itemsize
                for a in (state, w1, b1, w2, b2, w3, b3, log_std, noise))
            + b_pad * d_out * 4),
    )

    def _resident(arr):
        # Whole-array block; same block index every grid step -> weights stay VMEM-resident.
        return pl.BlockSpec(arr.shape, lambda i: (0, 0))

    out = pl.pallas_call(
        gaussian_policy_kernel,
        out_shape=jax.ShapeDtypeStruct((b_pad, d_out), jnp.float32),
        grid=(num_tiles,),
        in_specs=[
            pl.BlockSpec((tb, d_in), lambda i: (i, 0)),    # state batch tile
            _resident(w1), _resident(b1),
            _resident(w2), _resident(b2),
            _resident(w3), _resident(b3),
            _resident(log_std),
            pl.BlockSpec((tb, d_out), lambda i: (i, 0)),   # noise batch tile (lane-thin)
        ],
        out_specs=pl.BlockSpec((tb, d_out), lambda i: (i, 0)),
        compiler_params=pltpu.CompilerParams(
            dimension_semantics=("parallel",),
            # Explicit scoped-VMEM budget: tb=1024 tiles need ~10 MB incl. double buffers;
            # 32 MiB gives headroom on every generation (v5e default is only 16 MiB).
            vmem_limit_bytes=32 * 1024 * 1024),
        cost_estimate=cost,
    )(state, w1, b1, w2, b2, w3, b3, log_std, noise)

    return out[:B]


def init_params(key, num_inputs, num_outputs, hidden_sizes=(400, 300)):
    """PyTorch-default Linear init (U[-1/sqrt(fan_in), 1/sqrt(fan_in)]).

    Hidden-layer weights are stored [in, out] (transposed vs torch), zero-padded so hidden
    feature dims are multiples of 128, and cast to bf16 (halves the dominant weight DMA,
    MXU-native operands). The final layer and all biases stay f32; the output feature dim is
    NOT padded so the noise/action streams stay lane-thin in HBM. Zero padding is exact:
    padded hidden units evaluate to tanh(0)=0 and feed zero rows of the next weight.
    """
    sizes = [num_inputs] + list(hidden_sizes) + [num_outputs]
    padded = [num_inputs] + [_round_up(s, 128) for s in hidden_sizes] + [num_outputs]
    params = []
    n_layers = len(sizes) - 1
    for j in range(n_layers):
        fan_in, fan_out = sizes[j], sizes[j + 1]
        pin, pout = padded[j], padded[j + 1]
        key, kw, kb = jax.random.split(key, 3)
        bound = 1.0 / (fan_in ** 0.5)
        w = jax.random.uniform(kw, (fan_in, fan_out), jnp.float32, -bound, bound)
        b = jax.random.uniform(kb, (1, fan_out), jnp.float32, -bound, bound)
        w_p = jnp.zeros((pin, pout), jnp.float32).at[:fan_in, :fan_out].set(w)
        b_p = jnp.zeros((1, pout), jnp.float32).at[:, :fan_out].set(b)
        w_dtype = jnp.bfloat16 if j < n_layers - 1 else jnp.float32
        params += [w_p.astype(w_dtype), b_p]
    log_std = jnp.zeros((1, num_outputs), jnp.float32)  # nn.Parameter(torch.zeros(1, num_outputs))
    return tuple(params) + (log_std,)


if __name__ == "__main__":
    NUM_INPUTS = 32
    NUM_OUTPUTS = 8
    HIDDEN = (400, 300)

    key = jax.random.PRNGKey(0)
    k_params, k_data = jax.random.split(key)
    params = init_params(k_params, NUM_INPUTS, NUM_OUTPUTS, HIDDEN)

    w1, b1, w2, b2, w3, b3, log_std = params
    w1f, w2f = w1.astype(jnp.float32), w2.astype(jnp.float32)

    def reference(state, noise):
        h1 = jnp.tanh(state @ w1f + b1)
        h2 = jnp.tanh(h1 @ w2f + b2)
        mean = h2 @ w3 + b3
        return mean + jnp.exp(log_std) * noise

    # Small rollout batch (single tile + batch-row padding) and a mid-sized batch
    # (multi-tile "parallel" grid). Both must match the pure-JAX reference.
    for B in (6, 600):
        kb_ = jax.random.fold_in(k_data, B)
        ks, kn = jax.random.split(kb_)
        state = jax.random.normal(ks, (B, NUM_INPUTS), jnp.float32)
        noise = jax.random.normal(kn, (B, NUM_OUTPUTS), jnp.float32)

        action = gaussian_policy_forward(state, params, noise)
        jax.block_until_ready(action)

        ref = reference(state, noise)
        assert action.shape == (B, NUM_OUTPUTS)
        max_err = float(jnp.max(jnp.abs(action - ref)))
        assert jnp.allclose(action, ref, atol=3e-2, rtol=3e-2), max_err

    print("KERNEL_OK")
</pallas_src>

<mosaic_0001>
module attributes {stable_mosaic.version = 11 : i64} {
  func.func @gaussian_policy_kernel(%arg0: i32, %arg1: memref<8x32xf32, #tpu.memory_space<vmem>>, %arg2: memref<32x512xbf16, #tpu.memory_space<vmem>>, %arg3: memref<1x512xf32, #tpu.memory_space<vmem>>, %arg4: memref<512x384xbf16, #tpu.memory_space<vmem>>, %arg5: memref<1x384xf32, #tpu.memory_space<vmem>>, %arg6: memref<384x8xf32, #tpu.memory_space<vmem>>, %arg7: memref<1x8xf32, #tpu.memory_space<vmem>>, %arg8: memref<1x8xf32, #tpu.memory_space<vmem>>, %arg9: memref<8x8xf32, #tpu.memory_space<vmem>>, %arg10: memref<8x8xf32, #tpu.memory_space<vmem>>) attributes {dimension_semantics = [#tpu.dimension_semantics<parallel>], iteration_bounds = array<i64: 1>, scalar_prefetch = 0 : i64, scratch_operands = 0 : i64, tpu.core_type = #tpu.core_type<tc>, window_params = [{transform_indices = @transform_0, window_bounds = array<i64: 8, 32>}, {pipeline_mode = #tpu.pipeline_mode<synchronous>, transform_indices = @transform_1, window_bounds = array<i64: 32, 512>}, {pipeline_mode = #tpu.pipeline_mode<synchronous>, transform_indices = @transform_2, window_bounds = array<i64: 1, 512>}, {pipeline_mode = #tpu.pipeline_mode<synchronous>, transform_indices = @transform_3, window_bounds = array<i64: 512, 384>}, {pipeline_mode = #tpu.pipeline_mode<synchronous>, transform_indices = @transform_4, window_bounds = array<i64: 1, 384>}, {pipeline_mode = #tpu.pipeline_mode<synchronous>, transform_indices = @transform_5, window_bounds = array<i64: 384, 8>}, {pipeline_mode = #tpu.pipeline_mode<synchronous>, transform_indices = @transform_6, window_bounds = array<i64: 1, 8>}, {pipeline_mode = #tpu.pipeline_mode<synchronous>, transform_indices = @transform_7, window_bounds = array<i64: 1, 8>}, {transform_indices = @transform_8, window_bounds = array<i64: 8, 8>}, {transform_indices = @transform_9, window_bounds = array<i64: 8, 8>}]} {
    %c0 = arith.constant 0 : index
    %c0_0 = arith.constant 0 : index
    %0 = vector.load %arg1[%c0, %c0_0] : memref<8x32xf32, #tpu.memory_space<vmem>>, vector<8x32xf32>
    %1 = arith.truncf %0 : vector<8x32xf32> to vector<8x32xbf16>
    %c0_1 = arith.constant 0 : index
    %c0_2 = arith.constant 0 : index
    %2 = vector.load %arg2[%c0_1, %c0_2] : memref<32x512xbf16, #tpu.memory_space<vmem>>, vector<32x512xbf16>
    %cst = arith.constant dense<0.000000e+00> : vector<8x512xf32>
    %3 = tpu.matmul %1, %2, %cst {dimension_numbers = #tpu.dot_dimension_numbers<[1], [0], [0], [1], [0, 0, 1, 1], [], []>} : vector<8x32xbf16>, vector<32x512xbf16>, vector<8x512xf32> -> vector<8x512xf32>
    %c0_3 = arith.constant 0 : index
    %c0_4 = arith.constant 0 : index
    %4 = vector.load %arg3[%c0_3, %c0_4] : memref<1x512xf32, #tpu.memory_space<vmem>>, vector<1x512xf32>
    %5 = vector.broadcast %4 : vector<1x512xf32> to vector<8x512xf32>
    %6 = arith.addf %3, %5 : vector<8x512xf32>
    %7 = math.tanh %6 : vector<8x512xf32>
    %8 = arith.truncf %7 : vector<8x512xf32> to vector<8x512xbf16>
    %c0_5 = arith.constant 0 : index
    %c0_6 = arith.constant 0 : index
    %9 = vector.load %arg4[%c0_5, %c0_6] : memref<512x384xbf16, #tpu.memory_space<vmem>>, vector<512x384xbf16>
    %cst_7 = arith.constant dense<0.000000e+00> : vector<8x384xf32>
    %10 = tpu.matmul %8, %9, %cst_7 {dimension_numbers = #tpu.dot_dimension_numbers<[1], [0], [0], [1], [0, 0, 1, 1], [], []>} : vector<8x512xbf16>, vector<512x384xbf16>, vector<8x384xf32> -> vector<8x384xf32>
    %c0_8 = arith.constant 0 : index
    %c0_9 = arith.constant 0 : index
    %11 = vector.load %arg5[%c0_8, %c0_9] : memref<1x384xf32, #tpu.memory_space<vmem>>, vector<1x384xf32>
    %12 = vector.broadcast %11 : vector<1x384xf32> to vector<8x384xf32>
    %13 = arith.addf %10, %12 : vector<8x384xf32>
    %14 = math.tanh %13 : vector<8x384xf32>
    %c0_10 = arith.constant 0 : index
    %c0_11 = arith.constant 0 : index
    %15 = vector.load %arg6[%c0_10, %c0_11] : memref<384x8xf32, #tpu.memory_space<vmem>>, vector<384x8xf32>
    %cst_12 = arith.constant dense<0.000000e+00> : vector<8x8xf32>
    %16 = tpu.matmul %14, %15, %cst_12 {dimension_numbers = #tpu.dot_dimension_numbers<[1], [0], [0], [1], [0, 0, 1, 1], [], []>} : vector<8x384xf32>, vector<384x8xf32>, vector<8x8xf32> -> vector<8x8xf32>
    %c0_13 = arith.constant 0 : index
    %c0_14 = arith.constant 0 : index
    %17 = vector.load %arg7[%c0_13, %c0_14] : memref<1x8xf32, #tpu.memory_space<vmem>>, vector<1x8xf32>
    %18 = vector.broadcast %17 : vector<1x8xf32> to vector<8x8xf32>
    %19 = arith.addf %16, %18 : vector<8x8xf32>
    %c0_15 = arith.constant 0 : index
    %c0_16 = arith.constant 0 : index
    %20 = vector.load %arg8[%c0_15, %c0_16] : memref<1x8xf32, #tpu.memory_space<vmem>>, vector<1x8xf32>
    %21 = math.exp %20 : vector<1x8xf32>
    %c0_17 = arith.constant 0 : index
    %c0_18 = arith.constant 0 : index
    %22 = vector.load %arg9[%c0_17, %c0_18] : memref<8x8xf32, #tpu.memory_space<vmem>>, vector<8x8xf32>
    %23 = vector.broadcast %21 : vector<1x8xf32> to vector<8x8xf32>
    %24 = arith.mulf %23, %22 : vector<8x8xf32>
    %25 = arith.addf %19, %24 : vector<8x8xf32>
    %c0_19 = arith.constant 0 : index
    %c0_20 = arith.constant 0 : index
    %26 = vector.load %arg10[%c0_19, %c0_20] : memref<8x8xf32, #tpu.memory_space<vmem>>, vector<8x8xf32>
    tpu.vector_store %arg10[%c0_19, %c0_20], %25 {strides = array<i32>} : memref<8x8xf32, #tpu.memory_space<vmem>>, vector<8x8xf32>,
    return
  }
  func.func @transform_0(%arg0: i32) -> (i32, i32) {
    %c0_i32 = arith.constant 0 : i32
    %c0_i32_0 = arith.constant 0 : i32
    return %arg0, %c0_i32 : i32, i32
  }
  func.func @transform_1(%arg0: i32) -> (i32, i32) {
    %c0_i32 = arith.constant 0 : i32
    %c0_i32_0 = arith.constant 0 : i32
    %c0_i32_1 = arith.constant 0 : i32
    return %c0_i32, %c0_i32_0 : i32, i32
  }
  func.func @transform_2(%arg0: i32) -> (i32, i32) {
    %c0_i32 = arith.constant 0 : i32
    %c0_i32_0 = arith.constant 0 : i32
    %c0_i32_1 = arith.constant 0 : i32
    return %c0_i32, %c0_i32_0 : i32, i32
  }
  func.func @transform_3(%arg0: i32) -> (i32, i32) {
    %c0_i32 = arith.constant 0 : i32
    %c0_i32_0 = arith.constant 0 : i32
    %c0_i32_1 = arith.constant 0 : i32
    return %c0_i32, %c0_i32_0 : i32, i32
  }
  func.func @transform_4(%arg0: i32) -> (i32, i32) {
    %c0_i32 = arith.constant 0 : i32
    %c0_i32_0 = arith.constant 0 : i32
    %c0_i32_1 = arith.constant 0 : i32
    return %c0_i32, %c0_i32_0 : i32, i32
  }
  func.func @transform_5(%arg0: i32) -> (i32, i32) {
    %c0_i32 = arith.constant 0 : i32
    %c0_i32_0 = arith.constant 0 : i32
    %c0_i32_1 = arith.constant 0 : i32
    return %c0_i32, %c0_i32_0 : i32, i32
  }
  func.func @transform_6(%arg0: i32) -> (i32, i32) {
    %c0_i32 = arith.constant 0 : i32
    %c0_i32_0 = arith.constant 0 : i32
    %c0_i32_1 = arith.constant 0 : i32
    return %c0_i32, %c0_i32_0 : i32, i32
  }
  func.func @transform_7(%arg0: i32) -> (i32, i32) {
    %c0_i32 = arith.constant 0 : i32
    %c0_i32_0 = arith.constant 0 : i32
    %c0_i32_1 = arith.constant 0 : i32
    return %c0_i32, %c0_i32_0 : i32, i32
  }
  func.func @transform_8(%arg0: i32) -> (i32, i32) {
    %c0_i32 = arith.constant 0 : i32
    %c0_i32_0 = arith.constant 0 : i32
    return %arg0, %c0_i32 : i32, i32
  }
  func.func @transform_9(%arg0: i32) -> (i32, i32) {
    %c0_i32 = arith.constant 0 : i32
    %c0_i32_0 = arith.constant 0 : i32
    return %arg0, %c0_i32 : i32, i32
  }
}

</mosaic_0001>

<llo_original>
// kernel: gaussian_policy_forward.1
$region0: #{gaussian_policy_forward.1}
  #allocation0 [shape = 'u32[]', space=smem, size = 0x4, offset = 0x4, fixed_abs, tag = 'smem constant byte address 0x4 - core index']
  #allocation1 [shape = 'u32[144,128]{1,0:T(1,128)}', space=vmem, size = 0x12000, scoped, tag = 'internal scratch']
  %s0 = inlined_call_operand.vmem [shape: f32[8,32], index: 0, kind: input, shape index: {}]
  %s1 = inlined_call_operand.vmem [shape: bf16[32,512], index: 1, kind: input, shape index: {}]
  %s2 = inlined_call_operand.vmem [shape: f32[1,512], index: 2, kind: input, shape index: {}]
  %s3 = inlined_call_operand.hbm [shape: bf16[512,384], index: 3, kind: input, shape index: {}]
  %s4 = inlined_call_operand.vmem [shape: f32[1,384], index: 4, kind: input, shape index: {}]
  %s5 = inlined_call_operand.vmem [shape: f32[384,8], index: 5, kind: input, shape index: {}]
  %s6 = inlined_call_operand.vmem [shape: f32[1,8], index: 6, kind: input, shape index: {}]
  %s7 = inlined_call_operand.vmem [shape: f32[1,8], index: 7, kind: input, shape index: {}]
  %s8 = inlined_call_operand.vmem [shape: f32[8,8], index: 8, kind: input, shape index: {}]
  %s9 = inlined_call_operand.hbm [shape: f32[8,8], index: 9, kind: output, shape index: {}]
  %s10 = sld [smem:[#allocation0]]
  $region50: #{gaussian_policy_forward.1} parent=0
    _
  %s12 = ssub.s32 1, %s10
  %s13 = scalar_select 0, %s12, %s10
  $region1: #{gaussian_policy_forward.1} parent=0
    #allocation2 [shape = 'u8[393216]{0}', space=vmem, size = 0x60000, scoped, tag = 'input window, operand 3, single buffered']
    #allocation3 [shape = 's32[1]{0}', space=sflag, size = 0x4, scoped, tag = 'scoped memory for gaussian_policy_forward.1']
    #allocation4 [shape = 's32[1]{0}', space=sflag, size = 0x4, scoped, tag = 'scoped memory for gaussian_policy_forward.1']
    #allocation5 [shape = 'u8[4096]{0}', space=vmem, size = 0x1000, scoped, tag = 'output window, operand 0, single buffered']
    %14 = vsyncpa [#allocation3], 0
    %15 = vsyncpa [#allocation4], 0
    // Predicated region
    $region2: #{gaussian_policy_forward.1} parent=1 // pred_check
      _
    $region3: #{gaussian_policy_forward.1} parent=1 // pred_check_branch
      %17 = sbr.rel (0) target = $region5
    $region4: #{gaussian_policy_forward.1} parent=1 // pred_region
      _
    $region5: #{gaussian_policy_forward.1} parent=1 // pred_fallthru
      _
    // Predicated region
    $region6: #{gaussian_policy_forward.1} parent=1 // pred_check
      _
    $region7: #{gaussian_policy_forward.1} parent=1 // pred_check_branch
      %19 = sbr.rel (0) target = $region9
    $region8: #{gaussian_policy_forward.1} parent=1 // pred_region
      _
    $region9: #{gaussian_policy_forward.1} parent=1 // pred_fallthru
      _
    // Predicated region
    $region10: #{gaussian_policy_forward.1} parent=1 // pred_check
      _
    $region11: #{gaussian_policy_forward.1} parent=1 // pred_check_branch
      %21 = sbr.rel (0) target = $region13
    $region12: #{gaussian_policy_forward.1} parent=1 // pred_region
      _
    $region13: #{gaussian_policy_forward.1} parent=1 // pred_fallthru
      _
    // Predicated region
    $region14: #{gaussian_policy_forward.1} parent=1 // pred_check
      _
    $region15: #{gaussian_policy_forward.1} parent=1 // pred_check_branch
      %23 = sbr.rel (0) target = $region17
    $region16: #{gaussian_policy_forward.1} parent=1 // pred_region
      %s25 = ssub.s32 12288, 12288
      %26 = vsyncadd [#allocation3], %s25
      %s27 = sshll.u32 [#allocation2], 4
      %s28 = int_to_ptr.vmem [resolvable:$true] %s27
      %33 = dma.hbm_to_vmem [thread:$0]  %s3, 12288, %s28, [#allocation3], 192, 192, 12
    $region17: #{gaussian_policy_forward.1} parent=1 // pred_fallthru
      _
    // Predicated region
    $region18: #{gaussian_policy_forward.1} parent=1 // pred_check
      _
    $region19: #{gaussian_policy_forward.1} parent=1 // pred_check_branch
      %35 = sbr.rel (0) target = $region21
    $region20: #{gaussian_policy_forward.1} parent=1 // pred_region
      _
    $region21: #{gaussian_policy_forward.1} parent=1 // pred_fallthru
      _
    // Predicated region
    $region22: #{gaussian_policy_forward.1} parent=1 // pred_check
      _
    $region23: #{gaussian_policy_forward.1} parent=1 // pred_check_branch
      %37 = sbr.rel (0) target = $region25
    $region24: #{gaussian_policy_forward.1} parent=1 // pred_region
      _
    $region25: #{gaussian_policy_forward.1} parent=1 // pred_fallthru
      _
    // Predicated region
    $region26: #{gaussian_policy_forward.1} parent=1 // pred_check
      _
    $region27: #{gaussian_policy_forward.1} parent=1 // pred_check_branch
      %39 = sbr.rel (0) target = $region29
    $region28: #{gaussian_policy_forward.1} parent=1 // pred_region
      _
    $region29: #{gaussian_policy_forward.1} parent=1 // pred_fallthru
      _
    // Predicated region
    $region30: #{gaussian_policy_forward.1} parent=1 // pred_check
      _
    $region31: #{gaussian_policy_forward.1} parent=1 // pred_check_branch
      %41 = sbr.rel (0) target = $region33
    $region32: #{gaussian_policy_forward.1} parent=1 // pred_region
      _
    $region33: #{gaussian_policy_forward.1} parent=1 // pred_fallthru
      _
    // Predicated region
    $region34: #{gaussian_policy_forward.1} parent=1 // pred_check
      _
    $region35: #{gaussian_policy_forward.1} parent=1 // pred_check_branch
      %43 = sbr.rel (0) target = $region37
    $region36: #{gaussian_policy_forward.1} parent=1 // pred_region
      _
    $region37: #{gaussian_policy_forward.1} parent=1 // pred_fallthru
      _
    // Predicated region
    $region38: #{gaussian_policy_forward.1} parent=1 // pred_check
      _
    $region39: #{gaussian_policy_forward.1} parent=1 // pred_check_branch
      %45 = sbr.rel (0) target = $region41
    $region40: #{gaussian_policy_forward.1} parent=1 // pred_region
      %46 = dma.done [#allocation3], 12288
    $region41: #{gaussian_policy_forward.1} parent=1 // pred_fallthru
      _
    %v48 = vld [vmem:[%s0] sm:$0xff]
    %v49 = vpack.c.bf16 %v48, %v48
    %v50 = vld [vmem:[%s1] sm:$0xff]
    %v51 = vld [vmem:[%s1 + $0x8] sm:$0xff]
    %v52 = vld [vmem:[%s1 + $0x10] sm:$0xff]
    %v53 = vld [vmem:[%s1 + $0x18] sm:$0xff]
    %v54 = vld [vmem:[%s1 + $0x20] sm:$0xff]
    %v55 = vld [vmem:[%s1 + $0x28] sm:$0xff]
    %v56 = vld [vmem:[%s1 + $0x30] sm:$0xff]
    %v57 = vld [vmem:[%s1 + $0x38] sm:$0xff]
    %v58 = vld [vmem:[%s2] sm:$0xf]
    %v60 = vlaneseq
    %v61 = vshrl.u32 %v60, 7
    %v62 = vsub.s32 0, %v61
    %v63 = vrot.slane %v58, %v62
    %v64 = vlaneseq
    %v65 = vshrl.u32 %v64, 7
    %v66 = vsub.s32 1, %v65
    %v67 = vrot.slane %v58, %v66
    %v68 = vlaneseq
    %v69 = vshrl.u32 %v68, 7
    %v70 = vsub.s32 2, %v69
    %v71 = vrot.slane %v58, %v70
    %v72 = vlaneseq
    %v73 = vshrl.u32 %v72, 7
    %v74 = vsub.s32 3, %v73
    %v75 = vrot.slane %v58, %v74
    %v88 = vunpack.c.l.b16 %v50
    %v89 = vunpack.c.h.b16 %v50
    %v90 = vunpack.c.l.b16 %v51
    %v91 = vunpack.c.h.b16 %v51
    %v92 = vunpack.c.l.b16 %v52
    %v93 = vunpack.c.h.b16 %v52
    %v94 = vunpack.c.l.b16 %v53
    %v95 = vunpack.c.h.b16 %v53
    %v96 = vunpack.c.l.b16 %v54
    %v97 = vunpack.c.h.b16 %v54
    %v98 = vunpack.c.l.b16 %v55
    %v99 = vunpack.c.h.b16 %v55
    %v100 = vunpack.c.l.b16 %v56
    %v101 = vunpack.c.h.b16 %v56
    %v102 = vunpack.c.l.b16 %v57
    %v103 = vunpack.c.h.b16 %v57
    %v104 = vpack.c.b16 %v92, %v88
    %v105 = vpack.c.b16 %v93, %v89
    %v106 = vpack.c.b16 %v94, %v90
    %v107 = vpack.c.b16 %v95, %v91
    %v108 = vpack.c.b16 %v100, %v96
    %v109 = vpack.c.b16 %v101, %v97
    %v110 = vpack.c.b16 %v102, %v98
    %v111 = vpack.c.b16 %v103, %v99
    %vm120 = vcmask 261120
    %v122 = vsel %vm120, %v49, 0
    %124 = vmatprep.subr.bf16.mxu0 %v105
    %125 = vmatpush1.bf16.msra.mxu0 %v104
    %126 = vmatprep.subr.bf16.mxu0 %v109
    %127 = vmatpush1.bf16.msra.mxu0 %v108
    %128 = vmatprep.subr.bf16.mxu0 0
    %129 = vmatpush1.bf16.msra.mxu0 0
    %130 = vmatprep.subr.bf16.mxu0 0
    %131 = vmatpush1.bf16.msra.mxu0 0
    %132 = vmatprep.subr.bf16.mxu0 0
    %133 = vmatpush1.bf16.msra.mxu0 0
    %134 = vmatprep.subr.bf16.mxu0 0
    %135 = vmatpush1.bf16.msra.mxu0 0
    %136 = vmatprep.subr.bf16.mxu0 0
    %137 = vmatpush1.bf16.msra.mxu0 0
    %138 = vmatprep.subr.bf16.mxu0 0
    %139 = vmatpush1.bf16.msra.mxu0 0
    %140 = vmatprep.subr.bf16.mxu0 0
    %141 = vmatpush1.bf16.msra.mxu0 0
    %142 = vmatprep.subr.bf16.mxu0 0
    %143 = vmatpush1.bf16.msra.mxu0 0
    %144 = vmatprep.subr.bf16.mxu0 0
    %145 = vmatpush1.bf16.msra.mxu0 0
    %146 = vmatprep.subr.bf16.mxu0 0
    %147 = vmatpush1.bf16.msra.mxu0 0
    %148 = vmatprep.subr.bf16.mxu0 0
    %149 = vmatpush1.bf16.msra.mxu0 0
    %150 = vmatprep.subr.bf16.mxu0 0
    %151 = vmatpush1.bf16.msra.mxu0 0
    %152 = vmatprep.subr.bf16.mxu0 0
    %153 = vmatpush1.bf16.msra.mxu0 0
    %154 = vmatprep.subr.bf16.mxu0 0
    %155 = vmatpush1.bf16.msra.mxu0 0
    %156 = vmatprep.mubr.bf16.mxu0 0
    %157 = vmatmul.mubr.bf16.gmra.mrb[0].mxu0 %v122
    %v158 = vpop.f32.mrb[0].mxu0
    %v159 = vadd.f32 %v63, %v158
    %v160 = vpop.f32.mrb[0].mxu0
    %v161 = vadd.f32 %v67, %v160
    %v162 = vpop.f32.mrb[0].mxu0
    %v163 = vpop.f32.mrb[0].mxu0
    %164 = vdwg.mxu0
    %165 = vmatprep.subr.bf16.mxu0 %v107
    %166 = vmatpush1.bf16.msra.mxu0 %v106
    %167 = vmatprep.subr.bf16.mxu0 %v111
    %168 = vmatpush1.bf16.msra.mxu0 %v110
    %169 = vmatprep.subr.bf16.mxu0 0
    %170 = vmatpush1.bf16.msra.mxu0 0
    %171 = vmatprep.subr.bf16.mxu0 0
    %172 = vmatpush1.bf16.msra.mxu0 0
    %173 = vmatprep.subr.bf16.mxu0 0
    %174 = vmatpush1.bf16.msra.mxu0 0
    %175 = vmatprep.subr.bf16.mxu0 0
    %176 = vmatpush1.bf16.msra.mxu0 0
    %177 = vmatprep.subr.bf16.mxu0 0
    %178 = vmatpush1.bf16.msra.mxu0 0
    %179 = vmatprep.subr.bf16.mxu0 0
    %180 = vmatpush1.bf16.msra.mxu0 0
    %181 = vmatprep.subr.bf16.mxu0 0
    %182 = vmatpush1.bf16.msra.mxu0 0
    %183 = vmatprep.subr.bf16.mxu0 0
    %184 = vmatpush1.bf16.msra.mxu0 0
    %185 = vmatprep.subr.bf16.mxu0 0
    %186 = vmatpush1.bf16.msra.mxu0 0
    %187 = vmatprep.subr.bf16.mxu0 0
    %188 = vmatpush1.bf16.msra.mxu0 0
    %189 = vmatprep.subr.bf16.mxu0 0
    %190 = vmatpush1.bf16.msra.mxu0 0
    %191 = vmatprep.subr.bf16.mxu0 0
    %192 = vmatpush1.bf16.msra.mxu0 0
    %193 = vmatprep.subr.bf16.mxu0 0
    %194 = vmatpush1.bf16.msra.mxu0 0
    %195 = vmatprep.subr.bf16.mxu0 0
    %196 = vmatpush1.bf16.msra.mxu0 0
    %197 = vmatprep.mubr.bf16.mxu0 0
    %198 = vmatmul.mubr.bf16.gmra.mrb[0].mxu0 %v122
    %v199 = vpop.f32.mrb[0].mxu0
    %v200 = vadd.f32 %v71, %v199
    %v201 = vpop.f32.mrb[0].mxu0
    %v202 = vadd.f32 %v75, %v201
    %v203 = vpop.f32.mrb[0].mxu0
    %v204 = vpop.f32.mrb[0].mxu0
    %205 = vdwg.mxu0
    %v206 = vtanh.pop %v159
    %v207 = vtanh.pop %v161
    %v208 = vtanh.pop %v200
    %v209 = vtanh.pop %v202
    %v210 = vpack.c.bf16 %v206, %v206
    %v211 = vpack.c.bf16 %v207, %v207
    %v212 = vpack.c.bf16 %v208, %v208
    %v213 = vpack.c.bf16 %v209, %v209
    %v214 = vld [vmem:[#allocation2] sm:$0xff]
    %v215 = vld [vmem:[#allocation2 + $0x8] sm:$0xf]
    %v216 = vld [vmem:[#allocation2 + $0xc] sm:$0xff]
    %v217 = vld [vmem:[#allocation2 + $0x14] sm:$0xf]
    %v218 = vld [vmem:[#allocation2 + $0x18] sm:$0xff]
    %v219 = vld [vmem:[#allocation2 + $0x20] sm:$0xf]
    %v220 = vld [vmem:[#allocation2 + $0x24] sm:$0xff]
    %v221 = vld [vmem:[#allocation2 + $0x2c] sm:$0xf]
    %v222 = vld [vmem:[#allocation2 + $0x30] sm:$0xff]
    %v223 = vld [vmem:[#allocation2 + $0x38] sm:$0xf]
    %v224 = vld [vmem:[#allocation2 + $0x3c] sm:$0xff]
    %v225 = vld [vmem:[#allocation2 + $0x44] sm:$0xf]
    %v226 = vld [vmem:[#allocation2 + $0x48] sm:$0xff]
    %v227 = vld [vmem:[#allocation2 + $0x50] sm:$0xf]
    %v228 = vld [vmem:[#allocation2 + $0x54] sm:$0xff]
    %v229 = vld [vmem:[#allocation2 + $0x5c] sm:$0xf]
    %v230 = vld [vmem:[#allocation2 + $0x60] sm:$0xff]
    %v231 = vld [vmem:[#allocation2 + $0x68] sm:$0xf]
    %v232 = vld [vmem:[#allocation2 + $0x6c] sm:$0xff]
    %v233 = vld [vmem:[#allocation2 + $0x74] sm:$0xf]
    %v234 = vld [vmem:[#allocation2 + $0x78] sm:$0xff]
    %v235 = vld [vmem:[#allocation2 + $0x80] sm:$0xf]
    %v236 = vld [vmem:[#allocation2 + $0x84] sm:$0xff]
    %v237 = vld [vmem:[#allocation2 + $0x8c] sm:$0xf]
    %v238 = vld [vmem:[#allocation2 + $0x90] sm:$0xff]
    %v239 = vld [vmem:[#allocation2 + $0x98] sm:$0xf]
    %v240 = vld [vmem:[#allocation2 + $0x9c] sm:$0xff]
    %v241 = vld [vmem:[#allocation2 + $0xa4] sm:$0xf]
    %v242 = vld [vmem:[#allocation2 + $0xa8] sm:$0xff]
    %v243 = vld [vmem:[#allocation2 + $0xb0] sm:$0xf]
    %v244 = vld [vmem:[#allocation2 + $0xb4] sm:$0xff]
    %v245 = vld [vmem:[#allocation2 + $0xbc] sm:$0xf]
    %v246 = vld [vmem:[#allocation2 + $0xc0] sm:$0xff]
    %v247 = vld [vmem:[#allocation2 + $0xc8] sm:$0xf]
    %v248 = vld [vmem:[#allocation2 + $0xcc] sm:$0xff]
    %v249 = vld [vmem:[#allocation2 + $0xd4] sm:$0xf]
    %v250 = vld [vmem:[#allocation2 + $0xd8] sm:$0xff]
    %v251 = vld [vmem:[#allocation2 + $0xe0] sm:$0xf]
    %v252 = vld [vmem:[#allocation2 + $0xe4] sm:$0xff]
    %v253 = vld [vmem:[#allocation2 + $0xec] sm:$0xf]
    %v254 = vld [vmem:[#allocation2 + $0xf0] sm:$0xff]
    %v255 = vld [vmem:[#allocation2 + $0xf8] sm:$0xf]
    %v256 = vld [vmem:[#allocation2 + $0xfc] sm:$0xff]
    %v257 = vld [vmem:[#allocation2 + $0x104] sm:$0xf]
    %v258 = vld [vmem:[#allocation2 + $0x108] sm:$0xff]
    %v259 = vld [vmem:[#allocation2 + $0x110] sm:$0xf]
    %v260 = vld [vmem:[#allocation2 + $0x114] sm:$0xff]
    %v261 = vld [vmem:[#allocation2 + $0x11c] sm:$0xf]
    %v262 = vld [vmem:[#allocation2 + $0x120] sm:$0xff]
    %v263 = vld [vmem:[#allocation2 + $0x128] sm:$0xf]
    %v264 = vld [vmem:[#allocation2 + $0x12c] sm:$0xff]
    %v265 = vld [vmem:[#allocation2 + $0x134] sm:$0xf]
    %v266 = vld [vmem:[#allocation2 + $0x138] sm:$0xff]
    %v267 = vld [vmem:[#allocation2 + $0x140] sm:$0xf]
    %v268 = vld [vmem:[#allocation2 + $0x144] sm:$0xff]
    %v269 = vld [vmem:[#allocation2 + $0x14c] sm:$0xf]
    %v270 = vld [vmem:[#allocation2 + $0x150] sm:$0xff]
    %v271 = vld [vmem:[#allocation2 + $0x158] sm:$0xf]
    %v272 = vld [vmem:[#allocation2 + $0x15c] sm:$0xff]
    %v273 = vld [vmem:[#allocation2 + $0x164] sm:$0xf]
    %v274 = vld [vmem:[#allocation2 + $0x168] sm:$0xff]
    %v275 = vld [vmem:[#allocation2 + $0x170] sm:$0xf]
    %v276 = vld [vmem:[#allocation2 + $0x174] sm:$0xff]
    %v277 = vld [vmem:[#allocation2 + $0x17c] sm:$0xf]
    %v278 = vld [vmem:[#allocation2 + $0x180] sm:$0xff]
    %v279 = vld [vmem:[#allocation2 + $0x188] sm:$0xf]
    %v280 = vld [vmem:[#allocation2 + $0x18c] sm:$0xff]
    %v281 = vld [vmem:[#allocation2 + $0x194] sm:$0xf]
    %v282 = vld [vmem:[#allocation2 + $0x198] sm:$0xff]
    %v283 = vld [vmem:[#allocation2 + $0x1a0] sm:$0xf]
    %v284 = vld [vmem:[#allocation2 + $0x1a4] sm:$0xff]
    %v285 = vld [vmem:[#allocation2 + $0x1ac] sm:$0xf]
    %v286 = vld [vmem:[#allocation2 + $0x1b0] sm:$0xff]
    %v287 = vld [vmem:[#allocation2 + $0x1b8] sm:$0xf]
    %v288 = vld [vmem:[#allocation2 + $0x1bc] sm:$0xff]
    %v289 = vld [vmem:[#allocation2 + $0x1c4] sm:$0xf]
    %v290 = vld [vmem:[#allocation2 + $0x1c8] sm:$0xff]
    %v291 = vld [vmem:[#allocation2 + $0x1d0] sm:$0xf]
    %v292 = vld [vmem:[#allocation2 + $0x1d4] sm:$0xff]
    %v293 = vld [vmem:[#allocation2 + $0x1dc] sm:$0xf]
    %v294 = vld [vmem:[#allocation2 + $0x1e0] sm:$0xff]
    %v295 = vld [vmem:[#allocation2 + $0x1e8] sm:$0xf]
    %v296 = vld [vmem:[#allocation2 + $0x1ec] sm:$0xff]
    %v297 = vld [vmem:[#allocation2 + $0x1f4] sm:$0xf]
    %v298 = vld [vmem:[#allocation2 + $0x1f8] sm:$0xff]
    %v299 = vld [vmem:[#allocation2 + $0x200] sm:$0xf]
    %v300 = vld [vmem:[#allocation2 + $0x204] sm:$0xff]
    %v301 = vld [vmem:[#allocation2 + $0x20c] sm:$0xf]
    %v302 = vld [vmem:[#allocation2 + $0x210] sm:$0xff]
    %v303 = vld [vmem:[#allocation2 + $0x218] sm:$0xf]
    %v304 = vld [vmem:[#allocation2 + $0x21c] sm:$0xff]
    %v305 = vld [vmem:[#allocation2 + $0x224] sm:$0xf]
    %v306 = vld [vmem:[#allocation2 + $0x228] sm:$0xff]
    %v307 = vld [vmem:[#allocation2 + $0x230] sm:$0xf]
    %v308 = vld [vmem:[#allocation2 + $0x234] sm:$0xff]
    %v309 = vld [vmem:[#allocation2 + $0x23c] sm:$0xf]
    %v310 = vld [vmem:[#allocation2 + $0x240] sm:$0xff]
    %v311 = vld [vmem:[#allocation2 + $0x248] sm:$0xf]
    %v312 = vld [vmem:[#allocation2 + $0x24c] sm:$0xff]
    %v313 = vld [vmem:[#allocation2 + $0x254] sm:$0xf]
    %v314 = vld [vmem:[#allocation2 + $0x258] sm:$0xff]
    %v315 = vld [vmem:[#allocation2 + $0x260] sm:$0xf]
    %v316 = vld [vmem:[#allocation2 + $0x264] sm:$0xff]
    %v317 = vld [vmem:[#allocation2 + $0x26c] sm:$0xf]
    %v318 = vld [vmem:[#allocation2 + $0x270] sm:$0xff]
    %v319 = vld [vmem:[#allocation2 + $0x278] sm:$0xf]
    %v320 = vld [vmem:[#allocation2 + $0x27c] sm:$0xff]
    %v321 = vld [vmem:[#allocation2 + $0x284] sm:$0xf]
    %v322 = vld [vmem:[#allocation2 + $0x288] sm:$0xff]
    %v323 = vld [vmem:[#allocation2 + $0x290] sm:$0xf]
    %v324 = vld [vmem:[#allocation2 + $0x294] sm:$0xff]
    %v325 = vld [vmem:[#allocation2 + $0x29c] sm:$0xf]
    %v326 = vld [vmem:[#allocation2 + $0x2a0] sm:$0xff]
    %v327 = vld [vmem:[#allocation2 + $0x2a8] sm:$0xf]
    %v328 = vld [vmem:[#allocation2 + $0x2ac] sm:$0xff]
    %v329 = vld [vmem:[#allocation2 + $0x2b4] sm:$0xf]
    %v330 = vld [vmem:[#allocation2 + $0x2b8] sm:$0xff]
    %v331 = vld [vmem:[#allocation2 + $0x2c0] sm:$0xf]
    %v332 = vld [vmem:[#allocation2 + $0x2c4] sm:$0xff]
    %v333 = vld [vmem:[#allocation2 + $0x2cc] sm:$0xf]
    %v334 = vld [vmem:[#allocation2 + $0x2d0] sm:$0xff]
    %v335 = vld [vmem:[#allocation2 + $0x2d8] sm:$0xf]
    %v336 = vld [vmem:[#allocation2 + $0x2dc] sm:$0xff]
    %v337 = vld [vmem:[#allocation2 + $0x2e4] sm:$0xf]
    %v338 = vld [vmem:[#allocation2 + $0x2e8] sm:$0xff]
    %v339 = vld [vmem:[#allocation2 + $0x2f0] sm:$0xf]
    %v340 = vld [vmem:[#allocation2 + $0x2f4] sm:$0xff]
    %v341 = vld [vmem:[#allocation2 + $0x2fc] sm:$0xf]
    %v342 = vld [vmem:[%s4] sm:$0x7]
    %v344 = vlaneseq
    %v345 = vshrl.u32 %v344, 7
    %v346 = vsub.s32 0, %v345
    %v347 = vrot.slane %v342, %v346
    %v348 = vlaneseq
    %v349 = vshrl.u32 %v348, 7
    %v350 = vsub.s32 1, %v349
    %v351 = vrot.slane %v342, %v350
    %v352 = vlaneseq
    %v353 = vshrl.u32 %v352, 7
    %v354 = vsub.s32 2, %v353
    %v355 = vrot.slane %v342, %v354
    %v487 = vunpack.c.l.b16 %v214
    %v488 = vunpack.c.h.b16 %v214
    %v489 = vunpack.c.l.b16 %v215
    %v490 = vunpack.c.l.b16 %v216
    %v491 = vunpack.c.h.b16 %v216
    %v492 = vunpack.c.l.b16 %v217
    %v493 = vunpack.c.l.b16 %v218
    %v494 = vunpack.c.h.b16 %v218
    %v495 = vunpack.c.l.b16 %v219
    %v496 = vunpack.c.l.b16 %v220
    %v497 = vunpack.c.h.b16 %v220
    %v498 = vunpack.c.l.b16 %v221
    %v499 = vunpack.c.l.b16 %v222
    %v500 = vunpack.c.h.b16 %v222
    %v501 = vunpack.c.l.b16 %v223
    %v502 = vunpack.c.l.b16 %v224
    %v503 = vunpack.c.h.b16 %v224
    %v504 = vunpack.c.l.b16 %v225
    %v505 = vunpack.c.l.b16 %v226
    %v506 = vunpack.c.h.b16 %v226
    %v507 = vunpack.c.l.b16 %v227
    %v508 = vunpack.c.l.b16 %v228
    %v509 = vunpack.c.h.b16 %v228
    %v510 = vunpack.c.l.b16 %v229
    %v511 = vunpack.c.l.b16 %v230
    %v512 = vunpack.c.h.b16 %v230
    %v513 = vunpack.c.l.b16 %v231
    %v514 = vunpack.c.l.b16 %v232
    %v515 = vunpack.c.h.b16 %v232
    %v516 = vunpack.c.l.b16 %v233
    %v517 = vunpack.c.l.b16 %v234
    %v518 = vunpack.c.h.b16 %v234
    %v519 = vunpack.c.l.b16 %v235
    %v520 = vunpack.c.l.b16 %v236
    %v521 = vunpack.c.h.b16 %v236
    %v522 = vunpack.c.l.b16 %v237
    %v523 = vunpack.c.l.b16 %v238
    %v524 = vunpack.c.h.b16 %v238
    %v525 = vunpack.c.l.b16 %v239
    %v526 = vunpack.c.l.b16 %v240
    %v527 = vunpack.c.h.b16 %v240
    %v528 = vunpack.c.l.b16 %v241
    %v529 = vunpack.c.l.b16 %v242
    %v530 = vunpack.c.h.b16 %v242
    %v531 = vunpack.c.l.b16 %v243
    %v532 = vunpack.c.l.b16 %v244
    %v533 = vunpack.c.h.b16 %v244
    %v534 = vunpack.c.l.b16 %v245
    %v535 = vunpack.c.l.b16 %v246
    %v536 = vunpack.c.h.b16 %v246
    %v537 = vunpack.c.l.b16 %v247
    %v538 = vunpack.c.l.b16 %v248
    %v539 = vunpack.c.h.b16 %v248
    %v540 = vunpack.c.l.b16 %v249
    %v541 = vunpack.c.l.b16 %v250
    %v542 = vunpack.c.h.b16 %v250
    %v543 = vunpack.c.l.b16 %v251
    %v544 = vunpack.c.l.b16 %v252
    %v545 = vunpack.c.h.b16 %v252
    %v546 = vunpack.c.l.b16 %v253
    %v547 = vunpack.c.l.b16 %v254
    %v548 = vunpack.c.h.b16 %v254
    %v549 = vunpack.c.l.b16 %v255
    %v550 = vunpack.c.l.b16 %v256
    %v551 = vunpack.c.h.b16 %v256
    %v552 = vunpack.c.l.b16 %v257
    %v553 = vunpack.c.l.b16 %v258
    %v554 = vunpack.c.h.b16 %v258
    %v555 = vunpack.c.l.b16 %v259
    %v556 = vunpack.c.l.b16 %v260
    %v557 = vunpack.c.h.b16 %v260
    %v558 = vunpack.c.l.b16 %v261
    %v559 = vunpack.c.l.b16 %v262
    %v560 = vunpack.c.h.b16 %v262
    %v561 = vunpack.c.l.b16 %v263
    %v562 = vunpack.c.l.b16 %v264
    %v563 = vunpack.c.h.b16 %v264
    %v564 = vunpack.c.l.b16 %v265
    %v565 = vunpack.c.l.b16 %v266
    %v566 = vunpack.c.h.b16 %v266
    %v567 = vunpack.c.l.b16 %v267
    %v568 = vunpack.c.l.b16 %v268
    %v569 = vunpack.c.h.b16 %v268
    %v570 = vunpack.c.l.b16 %v269
    %v571 = vunpack.c.l.b16 %v270
    %v572 = vunpack.c.h.b16 %v270
    %v573 = vunpack.c.l.b16 %v271
    %v574 = vunpack.c.l.b16 %v272
    %v575 = vunpack.c.h.b16 %v272
    %v576 = vunpack.c.l.b16 %v273
    %v577 = vunpack.c.l.b16 %v274
    %v578 = vunpack.c.h.b16 %v274
    %v579 = vunpack.c.l.b16 %v275
    %v580 = vunpack.c.l.b16 %v276
    %v581 = vunpack.c.h.b16 %v276
    %v582 = vunpack.c.l.b16 %v277
    %v583 = vunpack.c.l.b16 %v278
    %v584 = vunpack.c.h.b16 %v278
    %v585 = vunpack.c.l.b16 %v279
    %v586 = vunpack.c.l.b16 %v280
    %v587 = vunpack.c.h.b16 %v280
    %v588 = vunpack.c.l.b16 %v281
    %v589 = vunpack.c.l.b16 %v282
    %v590 = vunpack.c.h.b16 %v282
    %v591 = vunpack.c.l.b16 %v283
    %v592 = vunpack.c.l.b16 %v284
    %v593 = vunpack.c.h.b16 %v284
    %v594 = vunpack.c.l.b16 %v285
    %v595 = vunpack.c.l.b16 %v286
    %v596 = vunpack.c.h.b16 %v286
    %v597 = vunpack.c.l.b16 %v287
    %v598 = vunpack.c.l.b16 %v288
    %v599 = vunpack.c.h.b16 %v288
    %v600 = vunpack.c.l.b16 %v289
    %v601 = vunpack.c.l.b16 %v290
    %v602 = vunpack.c.h.b16 %v290
    %v603 = vunpack.c.l.b16 %v291
    %v604 = vunpack.c.l.b16 %v292
    %v605 = vunpack.c.h.b16 %v292
    %v606 = vunpack.c.l.b16 %v293
    %v607 = vunpack.c.l.b16 %v294
    %v608 = vunpack.c.h.b16 %v294
    %v609 = vunpack.c.l.b16 %v295
    %v610 = vunpack.c.l.b16 %v296
    %v611 = vunpack.c.h.b16 %v296
    %v612 = vunpack.c.l.b16 %v297
    %v613 = vunpack.c.l.b16 %v298
    %v614 = vunpack.c.h.b16 %v298
    %v615 = vunpack.c.l.b16 %v299
    %v616 = vunpack.c.l.b16 %v300
    %v617 = vunpack.c.h.b16 %v300
    %v618 = vunpack.c.l.b16 %v301
    %v619 = vunpack.c.l.b16 %v302
    %v620 = vunpack.c.h.b16 %v302
    %v621 = vunpack.c.l.b16 %v303
    %v622 = vunpack.c.l.b16 %v304
    %v623 = vunpack.c.h.b16 %v304
    %v624 = vunpack.c.l.b16 %v305
    %v625 = vunpack.c.l.b16 %v306
    %v626 = vunpack.c.h.b16 %v306
    %v627 = vunpack.c.l.b16 %v307
    %v628 = vunpack.c.l.b16 %v308
    %v629 = vunpack.c.h.b16 %v308
    %v630 = vunpack.c.l.b16 %v309
    %v631 = vunpack.c.l.b16 %v310
    %v632 = vunpack.c.h.b16 %v310
    %v633 = vunpack.c.l.b16 %v311
    %v634 = vunpack.c.l.b16 %v312
    %v635 = vunpack.c.h.b16 %v312
    %v636 = vunpack.c.l.b16 %v313
    %v637 = vunpack.c.l.b16 %v314
    %v638 = vunpack.c.h.b16 %v314
    %v639 = vunpack.c.l.b16 %v315
    %v640 = vunpack.c.l.b16 %v316
    %v641 = vunpack.c.h.b16 %v316
    %v642 = vunpack.c.l.b16 %v317
    %v643 = vunpack.c.l.b16 %v318
    %v644 = vunpack.c.h.b16 %v318
    %v645 = vunpack.c.l.b16 %v319
    %v646 = vunpack.c.l.b16 %v320
    %v647 = vunpack.c.h.b16 %v320
    %v648 = vunpack.c.l.b16 %v321
    %v649 = vunpack.c.l.b16 %v322
    %v650 = vunpack.c.h.b16 %v322
    %v651 = vunpack.c.l.b16 %v323
    %v652 = vunpack.c.l.b16 %v324
    %v653 = vunpack.c.h.b16 %v324
    %v654 = vunpack.c.l.b16 %v325
    %v655 = vunpack.c.l.b16 %v326
    %v656 = vunpack.c.h.b16 %v326
    %v657 = vunpack.c.l.b16 %v327
    %v658 = vunpack.c.l.b16 %v328
    %v659 = vunpack.c.h.b16 %v328
    %v660 = vunpack.c.l.b16 %v329
    %v661 = vunpack.c.l.b16 %v330
    %v662 = vunpack.c.h.b16 %v330
    %v663 = vunpack.c.l.b16 %v331
    %v664 = vunpack.c.l.b16 %v332
    %v665 = vunpack.c.h.b16 %v332
    %v666 = vunpack.c.l.b16 %v333
    %v667 = vunpack.c.l.b16 %v334
    %v668 = vunpack.c.h.b16 %v334
    %v669 = vunpack.c.l.b16 %v335
    %v670 = vunpack.c.l.b16 %v336
    %v671 = vunpack.c.h.b16 %v336
    %v672 = vunpack.c.l.b16 %v337
    %v673 = vunpack.c.l.b16 %v338
    %v674 = vunpack.c.h.b16 %v338
    %v675 = vunpack.c.l.b16 %v339
    %v676 = vunpack.c.l.b16 %v340
    %v677 = vunpack.c.h.b16 %v340
    %v678 = vunpack.c.l.b16 %v341
    %v679 = vpack.c.b16 %v490, %v487
    %v680 = vpack.c.b16 %v491, %v488
    %v681 = vpack.c.b16 %v492, %v489
    %v682 = vpack.c.b16 %v496, %v493
    %v683 = vpack.c.b16 %v497, %v494
    %v684 = vpack.c.b16 %v498, %v495
    %v685 = vpack.c.b16 %v502, %v499
    %v686 = vpack.c.b16 %v503, %v500
    %v687 = vpack.c.b16 %v504, %v501
    %v688 = vpack.c.b16 %v508, %v505
    %v689 = vpack.c.b16 %v509, %v506
    %v690 = vpack.c.b16 %v510, %v507
    %v691 = vpack.c.b16 %v514, %v511
    %v692 = vpack.c.b16 %v515, %v512
    %v693 = vpack.c.b16 %v516, %v513
    %v694 = vpack.c.b16 %v520, %v517
    %v695 = vpack.c.b16 %v521, %v518
    %v696 = vpack.c.b16 %v522, %v519
    %v697 = vpack.c.b16 %v526, %v523
    %v698 = vpack.c.b16 %v527, %v524
    %v699 = vpack.c.b16 %v528, %v525
    %v700 = vpack.c.b16 %v532, %v529
    %v701 = vpack.c.b16 %v533, %v530
    %v702 = vpack.c.b16 %v534, %v531
    %v703 = vpack.c.b16 %v538, %v535
    %v704 = vpack.c.b16 %v539, %v536
    %v705 = vpack.c.b16 %v540, %v537
    %v706 = vpack.c.b16 %v544, %v541
    %v707 = vpack.c.b16 %v545, %v542
    %v708 = vpack.c.b16 %v546, %v543
    %v709 = vpack.c.b16 %v550, %v547
    %v710 = vpack.c.b16 %v551, %v548
    %v711 = vpack.c.b16 %v552, %v549
    %v712 = vpack.c.b16 %v556, %v553
    %v713 = vpack.c.b16 %v557, %v554
    %v714 = vpack.c.b16 %v558, %v555
    %v715 = vpack.c.b16 %v562, %v559
    %v716 = vpack.c.b16 %v563, %v560
    %v717 = vpack.c.b16 %v564, %v561
    %v718 = vpack.c.b16 %v568, %v565
    %v719 = vpack.c.b16 %v569, %v566
    %v720 = vpack.c.b16 %v570, %v567
    %v721 = vpack.c.b16 %v574, %v571
    %v722 = vpack.c.b16 %v575, %v572
    %v723 = vpack.c.b16 %v576, %v573
    %v724 = vpack.c.b16 %v580, %v577
    %v725 = vpack.c.b16 %v581, %v578
    %v726 = vpack.c.b16 %v582, %v579
    %v727 = vpack.c.b16 %v586, %v583
    %v728 = vpack.c.b16 %v587, %v584
    %v729 = vpack.c.b16 %v588, %v585
    %v730 = vpack.c.b16 %v592, %v589
    %v731 = vpack.c.b16 %v593, %v590
    %v732 = vpack.c.b16 %v594, %v591
    %v733 = vpack.c.b16 %v598, %v595
    %v734 = vpack.c.b16 %v599, %v596
    %v735 = vpack.c.b16 %v600, %v597
    %v736 = vpack.c.b16 %v604, %v601
    %v737 = vpack.c.b16 %v605, %v602
    %v738 = vpack.c.b16 %v606, %v603
    %v739 = vpack.c.b16 %v610, %v607
    %v740 = vpack.c.b16 %v611, %v608
    %v741 = vpack.c.b16 %v612, %v609
    %v742 = vpack.c.b16 %v616, %v613
    %v743 = vpack.c.b16 %v617, %v614
    %v744 = vpack.c.b16 %v618, %v615
    %v745 = vpack.c.b16 %v622, %v619
    %v746 = vpack.c.b16 %v623, %v620
    %v747 = vpack.c.b16 %v624, %v621
    %v748 = vpack.c.b16 %v628, %v625
    %v749 = vpack.c.b16 %v629, %v626
    %v750 = vpack.c.b16 %v630, %v627
    %v751 = vpack.c.b16 %v634, %v631
    %v752 = vpack.c.b16 %v635, %v632
    %v753 = vpack.c.b16 %v636, %v633
    %v754 = vpack.c.b16 %v640, %v637
    %v755 = vpack.c.b16 %v641, %v638
    %v756 = vpack.c.b16 %v642, %v639
    %v757 = vpack.c.b16 %v646, %v643
    %v758 = vpack.c.b16 %v647, %v644
    %v759 = vpack.c.b16 %v648, %v645
    %v760 = vpack.c.b16 %v652, %v649
    %v761 = vpack.c.b16 %v653, %v650
    %v762 = vpack.c.b16 %v654, %v651
    %v763 = vpack.c.b16 %v658, %v655
    %v764 = vpack.c.b16 %v659, %v656
    %v765 = vpack.c.b16 %v660, %v657
    %v766 = vpack.c.b16 %v664, %v661
    %v767 = vpack.c.b16 %v665, %v662
    %v768 = vpack.c.b16 %v666, %v663
    %v769 = vpack.c.b16 %v670, %v667
    %v770 = vpack.c.b16 %v671, %v668
    %v771 = vpack.c.b16 %v672, %v669
    %v772 = vpack.c.b16 %v676, %v673
    %v773 = vpack.c.b16 %v677, %v674
    %v774 = vpack.c.b16 %v678, %v675
    %871 = vmatprep.subr.bf16.mxu0 %v680
    %872 = vmatpush1.bf16.msra.mxu0 %v679
    %873 = vmatprep.subr.bf16.mxu0 %v683
    %874 = vmatpush1.bf16.msra.mxu0 %v682
    %875 = vmatprep.subr.bf16.mxu0 %v686
    %876 = vmatpush1.bf16.msra.mxu0 %v685
    %877 = vmatprep.subr.bf16.mxu0 %v689
    %878 = vmatpush1.bf16.msra.mxu0 %v688
    %879 = vmatprep.subr.bf16.mxu0 %v692
    %880 = vmatpush1.bf16.msra.mxu0 %v691
    %881 = vmatprep.subr.bf16.mxu0 %v695
    %882 = vmatpush1.bf16.msra.mxu0 %v694
    %883 = vmatprep.subr.bf16.mxu0 %v698
    %884 = vmatpush1.bf16.msra.mxu0 %v697
    %885 = vmatprep.subr.bf16.mxu0 %v701
    %886 = vmatpush1.bf16.msra.mxu0 %v700
    %887 = vmatprep.subr.bf16.mxu0 %v704
    %888 = vmatpush1.bf16.msra.mxu0 %v703
    %889 = vmatprep.subr.bf16.mxu0 %v707
    %890 = vmatpush1.bf16.msra.mxu0 %v706
    %891 = vmatprep.subr.bf16.mxu0 %v710
    %892 = vmatpush1.bf16.msra.mxu0 %v709
    %893 = vmatprep.subr.bf16.mxu0 %v713
    %894 = vmatpush1.bf16.msra.mxu0 %v712
    %895 = vmatprep.subr.bf16.mxu0 %v716
    %896 = vmatpush1.bf16.msra.mxu0 %v715
    %897 = vmatprep.subr.bf16.mxu0 %v719
    %898 = vmatpush1.bf16.msra.mxu0 %v718
    %899 = vmatprep.subr.bf16.mxu0 %v722
    %900 = vmatpush1.bf16.msra.mxu0 %v721
    %901 = vmatprep.subr.bf16.mxu0 %v725
    %902 = vmatpush1.bf16.msra.mxu0 %v724
    %903 = vmatprep.mubr.bf16.mxu0 %v211
    %904 = vmatmul.mubr.bf16.gmra.mrb[0].mxu0 %v210
    %v905 = vpop.f32.mrb[0].mxu0
    %v906 = vadd.f32 %v347, %v905
    %v907 = vpop.f32.mrb[0].mxu0
    %v908 = vadd.f32 %v351, %v907
    %v909 = vpop.f32.mrb[0].mxu0
    %v910 = vpop.f32.mrb[0].mxu0
    %911 = vdwg.mxu0
    %912 = vmatprep.subr.bf16.mxu0 %v728
    %913 = vmatpush1.bf16.msra.mxu0 %v727
    %914 = vmatprep.subr.bf16.mxu0 %v731
    %915 = vmatpush1.bf16.msra.mxu0 %v730
    %916 = vmatprep.subr.bf16.mxu0 %v734
    %917 = vmatpush1.bf16.msra.mxu0 %v733
    %918 = vmatprep.subr.bf16.mxu0 %v737
    %919 = vmatpush1.bf16.msra.mxu0 %v736
    %920 = vmatprep.subr.bf16.mxu0 %v740
    %921 = vmatpush1.bf16.msra.mxu0 %v739
    %922 = vmatprep.subr.bf16.mxu0 %v743
    %923 = vmatpush1.bf16.msra.mxu0 %v742
    %924 = vmatprep.subr.bf16.mxu0 %v746
    %925 = vmatpush1.bf16.msra.mxu0 %v745
    %926 = vmatprep.subr.bf16.mxu0 %v749
    %927 = vmatpush1.bf16.msra.mxu0 %v748
    %928 = vmatprep.subr.bf16.mxu0 %v752
    %929 = vmatpush1.bf16.msra.mxu0 %v751
    %930 = vmatprep.subr.bf16.mxu0 %v755
    %931 = vmatpush1.bf16.msra.mxu0 %v754
    %932 = vmatprep.subr.bf16.mxu0 %v758
    %933 = vmatpush1.bf16.msra.mxu0 %v757
    %934 = vmatprep.subr.bf16.mxu0 %v761
    %935 = vmatpush1.bf16.msra.mxu0 %v760
    %936 = vmatprep.subr.bf16.mxu0 %v764
    %937 = vmatpush1.bf16.msra.mxu0 %v763
    %938 = vmatprep.subr.bf16.mxu0 %v767
    %939 = vmatpush1.bf16.msra.mxu0 %v766
    %940 = vmatprep.subr.bf16.mxu0 %v770
    %941 = vmatpush1.bf16.msra.mxu0 %v769
    %942 = vmatprep.subr.bf16.mxu0 %v773
    %943 = vmatpush1.bf16.msra.mxu0 %v772
    %944 = vmatprep.mubr.bf16.mxu0 %v213
    %945 = vmatmul.mubr.bf16.gmra.mrb[0].mxu0 %v212
    %v946 = vpop.f32.mrb[0].mxu0
    %v947 = vadd.f32 %v906, %v946
    %v948 = vpop.f32.mrb[0].mxu0
    %v949 = vadd.f32 %v908, %v948
    %v950 = vpop.f32.mrb[0].mxu0
    %v951 = vpop.f32.mrb[0].mxu0
    %952 = vdwg.mxu0
    %953 = vmatprep.subr.bf16.mxu0 0
    %954 = vmatpush1.bf16.msra.mxu0 %v681
    %955 = vmatprep.subr.bf16.mxu0 0
    %956 = vmatpush1.bf16.msra.mxu0 %v684
    %957 = vmatprep.subr.bf16.mxu0 0
    %958 = vmatpush1.bf16.msra.mxu0 %v687
    %959 = vmatprep.subr.bf16.mxu0 0
    %960 = vmatpush1.bf16.msra.mxu0 %v690
    %961 = vmatprep.subr.bf16.mxu0 0
    %962 = vmatpush1.bf16.msra.mxu0 %v693
    %963 = vmatprep.subr.bf16.mxu0 0
    %964 = vmatpush1.bf16.msra.mxu0 %v696
    %965 = vmatprep.subr.bf16.mxu0 0
    %966 = vmatpush1.bf16.msra.mxu0 %v699
    %967 = vmatprep.subr.bf16.mxu0 0
    %968 = vmatpush1.bf16.msra.mxu0 %v702
    %969 = vmatprep.subr.bf16.mxu0 0
    %970 = vmatpush1.bf16.msra.mxu0 %v705
    %971 = vmatprep.subr.bf16.mxu0 0
    %972 = vmatpush1.bf16.msra.mxu0 %v708
    %973 = vmatprep.subr.bf16.mxu0 0
    %974 = vmatpush1.bf16.msra.mxu0 %v711
    %975 = vmatprep.subr.bf16.mxu0 0
    %976 = vmatpush1.bf16.msra.mxu0 %v714
    %977 = vmatprep.subr.bf16.mxu0 0
    %978 = vmatpush1.bf16.msra.mxu0 %v717
    %979 = vmatprep.subr.bf16.mxu0 0
    %980 = vmatpush1.bf16.msra.mxu0 %v720
    %981 = vmatprep.subr.bf16.mxu0 0
    %982 = vmatpush1.bf16.msra.mxu0 %v723
    %983 = vmatprep.subr.bf16.mxu0 0
    %984 = vmatpush1.bf16.msra.mxu0 %v726
    %985 = vmatprep.mubr.bf16.mxu0 %v211
    %986 = vmatmul.mubr.bf16.gmra.mrb[0].mxu0 %v210
    %v987 = vpop.f32.mrb[0].mxu0
    %v988 = vadd.f32 %v355, %v987
    %v989 = vpop.f32.mrb[0].mxu0
    %v990 = vpop.f32.mrb[0].mxu0
    %v991 = vpop.f32.mrb[0].mxu0
    %992 = vdwg.mxu0
    %993 = vmatprep.subr.bf16.mxu0 0
    %994 = vmatpush1.bf16.msra.mxu0 %v729
    %995 = vmatprep.subr.bf16.mxu0 0
    %996 = vmatpush1.bf16.msra.mxu0 %v732
    %997 = vmatprep.subr.bf16.mxu0 0
    %998 = vmatpush1.bf16.msra.mxu0 %v735
    %999 = vmatprep.subr.bf16.mxu0 0
    %1000 = vmatpush1.bf16.msra.mxu0 %v738
    %1001 = vmatprep.subr.bf16.mxu0 0
    %1002 = vmatpush1.bf16.msra.mxu0 %v741
    %1003 = vmatprep.subr.bf16.mxu0 0
    %1004 = vmatpush1.bf16.msra.mxu0 %v744
    %1005 = vmatprep.subr.bf16.mxu0 0
    %1006 = vmatpush1.bf16.msra.mxu0 %v747
    %1007 = vmatprep.subr.bf16.mxu0 0
    %1008 = vmatpush1.bf16.msra.mxu0 %v750
    %1009 = vmatprep.subr.bf16.mxu0 0
    %1010 = vmatpush1.bf16.msra.mxu0 %v753
    %1011 = vmatprep.subr.bf16.mxu0 0
    %1012 = vmatpush1.bf16.msra.mxu0 %v756
    %1013 = vmatprep.subr.bf16.mxu0 0
    %1014 = vmatpush1.bf16.msra.mxu0 %v759
    %1015 = vmatprep.subr.bf16.mxu0 0
    %1016 = vmatpush1.bf16.msra.mxu0 %v762
    %1017 = vmatprep.subr.bf16.mxu0 0
    %1018 = vmatpush1.bf16.msra.mxu0 %v765
    %1019 = vmatprep.subr.bf16.mxu0 0
    %1020 = vmatpush1.bf16.msra.mxu0 %v768
    %1021 = vmatprep.subr.bf16.mxu0 0
    %1022 = vmatpush1.bf16.msra.mxu0 %v771
    %1023 = vmatprep.subr.bf16.mxu0 0
    %1024 = vmatpush1.bf16.msra.mxu0 %v774
    %1025 = vmatprep.mubr.bf16.mxu0 %v213
    %1026 = vmatmul.mubr.bf16.gmra.mrb[0].mxu0 %v212
    %v1027 = vpop.f32.mrb[0].mxu0
    %v1028 = vadd.f32 %v988, %v1027
    %v1029 = vpop.f32.mrb[0].mxu0
    %v1030 = vpop.f32.mrb[0].mxu0
    %v1031 = vpop.f32.mrb[0].mxu0
    %1032 = vdwg.mxu0
    %v1033 = vtanh.pop %v947
    %v1034 = vtanh.pop %v949
    %v1035 = vtanh.pop %v1028
    %v1036 = vld [vmem:[%s5] sm:$0xff]
    %v1037 = vld [vmem:[%s5 + $0x8] sm:$0xff]
    %v1038 = vld [vmem:[%s5 + $0x10] sm:$0xff]
    %v1039 = vld [vmem:[%s5 + $0x18] sm:$0xff]
    %v1040 = vld [vmem:[%s5 + $0x20] sm:$0xff]
    %v1041 = vld [vmem:[%s5 + $0x28] sm:$0xff]
    %v1042 = vld [vmem:[%s5 + $0x30] sm:$0xff]
    %v1043 = vld [vmem:[%s5 + $0x38] sm:$0xff]
    %v1044 = vld [vmem:[%s5 + $0x40] sm:$0xff]
    %v1045 = vld [vmem:[%s5 + $0x48] sm:$0xff]
    %v1046 = vld [vmem:[%s5 + $0x50] sm:$0xff]
    %v1047 = vld [vmem:[%s5 + $0x58] sm:$0xff]
    %v1048 = vld [vmem:[%s5 + $0x60] sm:$0xff]
    %v1049 = vld [vmem:[%s5 + $0x68] sm:$0xff]
    %v1050 = vld [vmem:[%s5 + $0x70] sm:$0xff]
    %v1051 = vld [vmem:[%s5 + $0x78] sm:$0xff]
    %v1052 = vld [vmem:[%s5 + $0x80] sm:$0xff]
    %v1053 = vld [vmem:[%s5 + $0x88] sm:$0xff]
    %v1054 = vld [vmem:[%s5 + $0x90] sm:$0xff]
    %v1055 = vld [vmem:[%s5 + $0x98] sm:$0xff]
    %v1056 = vld [vmem:[%s5 + $0xa0] sm:$0xff]
    %v1057 = vld [vmem:[%s5 + $0xa8] sm:$0xff]
    %v1058 = vld [vmem:[%s5 + $0xb0] sm:$0xff]
    %v1059 = vld [vmem:[%s5 + $0xb8] sm:$0xff]
    %v1060 = vld [vmem:[%s5 + $0xc0] sm:$0xff]
    %v1061 = vld [vmem:[%s5 + $0xc8] sm:$0xff]
    %v1062 = vld [vmem:[%s5 + $0xd0] sm:$0xff]
    %v1063 = vld [vmem:[%s5 + $0xd8] sm:$0xff]
    %v1064 = vld [vmem:[%s5 + $0xe0] sm:$0xff]
    %v1065 = vld [vmem:[%s5 + $0xe8] sm:$0xff]
    %v1066 = vld [vmem:[%s5 + $0xf0] sm:$0xff]
    %v1067 = vld [vmem:[%s5 + $0xf8] sm:$0xff]
    %v1068 = vld [vmem:[%s5 + $0x100] sm:$0xff]
    %v1069 = vld [vmem:[%s5 + $0x108] sm:$0xff]
    %v1070 = vld [vmem:[%s5 + $0x110] sm:$0xff]
    %v1071 = vld [vmem:[%s5 + $0x118] sm:$0xff]
    %v1072 = vld [vmem:[%s5 + $0x120] sm:$0xff]
    %v1073 = vld [vmem:[%s5 + $0x128] sm:$0xff]
    %v1074 = vld [vmem:[%s5 + $0x130] sm:$0xff]
    %v1075 = vld [vmem:[%s5 + $0x138] sm:$0xff]
    %v1076 = vld [vmem:[%s5 + $0x140] sm:$0xff]
    %v1077 = vld [vmem:[%s5 + $0x148] sm:$0xff]
    %v1078 = vld [vmem:[%s5 + $0x150] sm:$0xff]
    %v1079 = vld [vmem:[%s5 + $0x158] sm:$0xff]
    %v1080 = vld [vmem:[%s5 + $0x160] sm:$0xff]
    %v1081 = vld [vmem:[%s5 + $0x168] sm:$0xff]
    %v1082 = vld [vmem:[%s5 + $0x170] sm:$0xff]
    %v1083 = vld [vmem:[%s5 + $0x178] sm:$0xff]
    %v1084 = vld [vmem:[%s6] sm:$0x1]
    %v1086 = vlaneseq
    %v1087 = vshrl.u32 %v1086, 7
    %v1088 = vsub.s32 0, %v1087
    %v1089 = vrot.slane %v1084, %v1088
    %1091 = vmatprep.subr.mxu0 0.0
    %1092 = vmatpush1.msra.mxu0 %v1036
    %1093 = vmatprep.subr.mxu0 0.0
    %1094 = vmatpush1.msra.mxu0 %v1037
    %1095 = vmatprep.subr.mxu0 0.0
    %1096 = vmatpush1.msra.mxu0 %v1038
    %1097 = vmatprep.subr.mxu0 0.0
    %1098 = vmatpush1.msra.mxu0 %v1039
    %1099 = vmatprep.subr.mxu0 0.0
    %1100 = vmatpush1.msra.mxu0 %v1040
    %1101 = vmatprep.subr.mxu0 0.0
    %1102 = vmatpush1.msra.mxu0 %v1041
    %1103 = vmatprep.subr.mxu0 0.0
    %1104 = vmatpush1.msra.mxu0 %v1042
    %1105 = vmatprep.subr.mxu0 0.0
    %1106 = vmatpush1.msra.mxu0 %v1043
    %1107 = vmatprep.subr.mxu0 0.0
    %1108 = vmatpush1.msra.mxu0 %v1044
    %1109 = vmatprep.subr.mxu0 0.0
    %1110 = vmatpush1.msra.mxu0 %v1045
    %1111 = vmatprep.subr.mxu0 0.0
    %1112 = vmatpush1.msra.mxu0 %v1046
    %1113 = vmatprep.subr.mxu0 0.0
    %1114 = vmatpush1.msra.mxu0 %v1047
    %1115 = vmatprep.subr.mxu0 0.0
    %1116 = vmatpush1.msra.mxu0 %v1048
    %1117 = vmatprep.subr.mxu0 0.0
    %1118 = vmatpush1.msra.mxu0 %v1049
    %1119 = vmatprep.subr.mxu0 0.0
    %1120 = vmatpush1.msra.mxu0 %v1050
    %1121 = vmatprep.subr.mxu0 0.0
    %1122 = vmatpush1.msra.mxu0 %v1051
    %1123 = vmatprep.subr.mxu0 0.0
    %1124 = vmatpush1.msra.mxu0 %v1052
    %1125 = vmatprep.subr.mxu0 0.0
    %1126 = vmatpush1.msra.mxu0 %v1053
    %1127 = vmatprep.subr.mxu0 0.0
    %1128 = vmatpush1.msra.mxu0 %v1054
    %1129 = vmatprep.subr.mxu0 0.0
    %1130 = vmatpush1.msra.mxu0 %v1055
    %1131 = vmatprep.subr.mxu0 0.0
    %1132 = vmatpush1.msra.mxu0 %v1056
    %1133 = vmatprep.subr.mxu0 0.0
    %1134 = vmatpush1.msra.mxu0 %v1057
    %1135 = vmatprep.subr.mxu0 0.0
    %1136 = vmatpush1.msra.mxu0 %v1058
    %1137 = vmatprep.subr.mxu0 0.0
    %1138 = vmatpush1.msra.mxu0 %v1059
    %1139 = vmatprep.subr.mxu0 0.0
    %1140 = vmatpush1.msra.mxu0 %v1060
    %1141 = vmatprep.subr.mxu0 0.0
    %1142 = vmatpush1.msra.mxu0 %v1061
    %1143 = vmatprep.subr.mxu0 0.0
    %1144 = vmatpush1.msra.mxu0 %v1062
    %1145 = vmatprep.subr.mxu0 0.0
    %1146 = vmatpush1.msra.mxu0 %v1063
    %1147 = vmatprep.subr.mxu0 0.0
    %1148 = vmatpush1.msra.mxu0 %v1064
    %1149 = vmatprep.subr.mxu0 0.0
    %1150 = vmatpush1.msra.mxu0 %v1065
    %1151 = vmatprep.subr.mxu0 0.0
    %1152 = vmatpush1.msra.mxu0 %v1066
    %1153 = vmatprep.subr.mxu0 0.0
    %1154 = vmatpush1.msra.mxu0 %v1067
    %1155 = vmatprep.mubr.f32.mxu0 %v1034
    %1156 = vmatmul.mubr.f32.gmra.mrb[0].mxu0 %v1033
    %v1157 = vpop.f32.mrb[0].mxu0
    %v1158 = vadd.f32 %v1089, %v1157
    %v1159 = vpop.f32.mrb[0].mxu0
    %1160 = vdwg.mxu0
    %1161 = vmatprep.subr.mxu0 0.0
    %1162 = vmatpush1.msra.mxu0 %v1068
    %1163 = vmatprep.subr.mxu0 0.0
    %1164 = vmatpush1.msra.mxu0 %v1069
    %1165 = vmatprep.subr.mxu0 0.0
    %1166 = vmatpush1.msra.mxu0 %v1070
    %1167 = vmatprep.subr.mxu0 0.0
    %1168 = vmatpush1.msra.mxu0 %v1071
    %1169 = vmatprep.subr.mxu0 0.0
    %1170 = vmatpush1.msra.mxu0 %v1072
    %1171 = vmatprep.subr.mxu0 0.0
    %1172 = vmatpush1.msra.mxu0 %v1073
    %1173 = vmatprep.subr.mxu0 0.0
    %1174 = vmatpush1.msra.mxu0 %v1074
    %1175 = vmatprep.subr.mxu0 0.0
    %1176 = vmatpush1.msra.mxu0 %v1075
    %1177 = vmatprep.subr.mxu0 0.0
    %1178 = vmatpush1.msra.mxu0 %v1076
    %1179 = vmatprep.subr.mxu0 0.0
    %1180 = vmatpush1.msra.mxu0 %v1077
    %1181 = vmatprep.subr.mxu0 0.0
    %1182 = vmatpush1.msra.mxu0 %v1078
    %1183 = vmatprep.subr.mxu0 0.0
    %1184 = vmatpush1.msra.mxu0 %v1079
    %1185 = vmatprep.subr.mxu0 0.0
    %1186 = vmatpush1.msra.mxu0 %v1080
    %1187 = vmatprep.subr.mxu0 0.0
    %1188 = vmatpush1.msra.mxu0 %v1081
    %1189 = vmatprep.subr.mxu0 0.0
    %1190 = vmatpush1.msra.mxu0 %v1082
    %1191 = vmatprep.subr.mxu0 0.0
    %1192 = vmatpush1.msra.mxu0 %v1083
    %1193 = vmatprep.subr.mxu0 0.0
    %1194 = vmatpush1.msra.mxu0 0.0
    %1195 = vmatprep.subr.mxu0 0.0
    %1196 = vmatpush1.msra.mxu0 0.0
    %1197 = vmatprep.subr.mxu0 0.0
    %1198 = vmatpush1.msra.mxu0 0.0
    %1199 = vmatprep.subr.mxu0 0.0
    %1200 = vmatpush1.msra.mxu0 0.0
    %1201 = vmatprep.subr.mxu0 0.0
    %1202 = vmatpush1.msra.mxu0 0.0
    %1203 = vmatprep.subr.mxu0 0.0
    %1204 = vmatpush1.msra.mxu0 0.0
    %1205 = vmatprep.subr.mxu0 0.0
    %1206 = vmatpush1.msra.mxu0 0.0
    %1207 = vmatprep.subr.mxu0 0.0
    %1208 = vmatpush1.msra.mxu0 0.0
    %1209 = vmatprep.subr.mxu0 0.0
    %1210 = vmatpush1.msra.mxu0 0.0
    %1211 = vmatprep.subr.mxu0 0.0
    %1212 = vmatpush1.msra.mxu0 0.0
    %1213 = vmatprep.subr.mxu0 0.0
    %1214 = vmatpush1.msra.mxu0 0.0
    %1215 = vmatprep.subr.mxu0 0.0
    %1216 = vmatpush1.msra.mxu0 0.0
    %1217 = vmatprep.subr.mxu0 0.0
    %1218 = vmatpush1.msra.mxu0 0.0
    %1219 = vmatprep.subr.mxu0 0.0
    %1220 = vmatpush1.msra.mxu0 0.0
    %1221 = vmatprep.subr.mxu0 0.0
    %1222 = vmatpush1.msra.mxu0 0.0
    %1223 = vmatprep.subr.mxu0 0.0
    %1224 = vmatpush1.msra.mxu0 0.0
    %1225 = vmatprep.mubr.f32.mxu0 0.0
    %1226 = vmatmul.mubr.f32.gmra.mrb[0].mxu0 %v1035
    %v1227 = vpop.f32.mrb[0].mxu0
    %v1228 = vadd.f32 %v1158, %v1227
    %v1229 = vpop.f32.mrb[0].mxu0
    %1230 = vdwg.mxu0
    %v1231 = vld [vmem:[%s7] sm:$0x1]
    %v1232 = vmul.f32 %v1231, 1.442695
    %v1233 = vpow.pop %v1232
    %v1234 = vld [vmem:[%s8] sm:$0xff]
    %v1236 = vlaneseq
    %v1237 = vshrl.u32 %v1236, 7
    %v1238 = vsub.s32 0, %v1237
    %v1239 = vrot.slane %v1233, %v1238
    %v1241 = vmul.f32 %v1239, %v1234
    %v1242 = vadd.f32 %v1228, %v1241
    %vm1243 = vcmask 64512
    %1244 = vst.msk [vmem:[#allocation5] sm:$0xff] %vm1243, %v1242
    // Predicated region
    $region42: #{gaussian_policy_forward.1} parent=1 // pred_check
      _
    $region43: #{gaussian_policy_forward.1} parent=1 // pred_check_branch
      %1246 = sbr.rel (0) target = $region45
    $region44: #{gaussian_policy_forward.1} parent=1 // pred_region
      %s1248 = ssub.s32 128, 128
      %1249 = vsyncadd [#allocation4], %s1248
      %s1251 = sshll.u32 [#allocation5], 4
      %s1252 = int_to_ptr.vmem [resolvable:$true] %s1251
      %1254 = dma.vmem_to_hbm [thread:$0]  %s1252, 128, %s9, [#allocation4]
    $region45: #{gaussian_policy_forward.1} parent=1 // pred_fallthru
      _
    // Predicated region
    $region46: #{gaussian_policy_forward.1} parent=1 // pred_check
      _
    $region47: #{gaussian_policy_forward.1} parent=1 // pred_check_branch
      %1256 = sbr.rel (0) target = $region49
    $region48: #{gaussian_policy_forward.1} parent=1 // pred_region
      %1257 = dma.done [#allocation4], 128
    $region49: #{gaussian_policy_forward.1} parent=1 // pred_fallthru
      _
    %1258 = vsyncpa [#allocation3], 1
    %1259 = vsyncpa [#allocation4], 1

</llo_original>
